<compile_context>
chip_gen: v5e
topology: v5e:2x2
jax: 0.10.0
libtpu: 0.0.40
codegen_flags: <defaults>
</compile_context>

<pallas_src>
import functools

import jax
import jax.numpy as jnp
from jax.experimental import pallas as pl
from jax.experimental.pallas import tpu as pltpu

_BN_EPS = 1e-5


def _round_up(v, m):
    return ((v + m - 1) // m) * m


# ----------------------------------------------------------------------------
# geometry (all static Python ints)
# ----------------------------------------------------------------------------
def _geometry(h, w, n_per):
    hp, wp = h + 2, w + 2                       # 1-pixel conv-padding ring
    p = hp * wp                                 # flattened padded image
    slot = _round_up(p, 128)                    # per-image lane slot (lane-dense)
    halo = wp + 1                               # max |3x3 tap offset| on flat grid
    g_out = n_per * slot                        # output lanes per grid step
    h_off = halo                                # left offset of extended h window
    w_ext = _round_up(g_out + 2 * halo, 128)    # layer-1 / intermediate extent
    x_left = _round_up(2 * halo, 128)           # left zero pad of the x strip
    w_x = _round_up(x_left + w_ext, 128)        # total x lanes
    # tap t = kh*3 + kw  <->  flat offset (kh-1)*wp + (kw-1) on the padded grid
    taps = tuple((kh - 1) * wp + (kw - 1) for kh in range(3) for kw in range(3))
    return dict(hp=hp, wp=wp, p=p, slot=slot, halo=halo, g_out=g_out,
                h_off=h_off, w_ext=w_ext, x_left=x_left, w_x=w_x, taps=taps)


def _grid_groups(n):
    """One image per grid step on multi-TensorCore chips (v7x: 2 TCs, 'parallel'
    grid feeds both); fold the whole batch into lanes (single grid step) on
    single-TC chips (v5e/v6e) to halve per-step prologue overhead."""
    if n <= 1:
        return 1
    try:
        kind = jax.devices()[0].device_kind.lower()
    except Exception:
        return n
    single_tc = any(t in kind for t in
                    ("v5e", "v5 lite", "v5lite", "v6e", "v6 lite", "v6lite"))
    return 1 if single_tc else n


# ----------------------------------------------------------------------------
# Pallas kernels
# ----------------------------------------------------------------------------
def _decoder_kernel(x_ref, w1_ref, b1_ref, mask_ref, w2_ref, s2_ref, o_ref, *,
                    taps, x_left, h_off, w_ext, g_out):
    """Fused  relu(bn(d_conv2(d_conv1(x))))  over one lane strip of images.

      x_ref   : (1, c_in, w_x)      f32   folded, zero-padded image strip
      w1_ref  : (c_mid, 9*c_in)     f32   layer-1 weights, tap-major columns
      b1_ref  : (c_mid, 1)          f32   layer-1 bias
      mask_ref: (1, w_ext)          f32   1.0 on interiors of the padded grids
      w2_ref  : (c_out, 9*c_mid)    bf16  layer-2 weights (BN scale folded)
      s2_ref  : (c_out, 1)          f32   folded bias*scale + shift
      o_ref   : (1, c_out, g_out)   f32   lane-dense output strip
    """
    x = x_ref[0]                                              # (c_in, w_x)

    # ---- layer 1 (d_conv1): stack 9 shifted tap slices -> ONE contraction ----
    x_stack = jnp.concatenate(
        [x[:, x_left - h_off + d: x_left - h_off + d + w_ext] for d in taps],
        axis=0)                                               # (9*c_in, w_ext)
    h = jnp.dot(w1_ref[...], x_stack, preferred_element_type=jnp.float32)
    # bias, then zero the conv-padding ring / inter-image gaps so layer 2 sees
    # true zero padding; the intermediate stays in registers/VMEM values (no
    # scratch write, no zero-fill).
    h = (h + b1_ref[...]) * mask_ref[...]                     # (c_mid, w_ext) f32
    h = h.astype(jnp.bfloat16)                                # MXU operand dtype

    # ---- layer 2 (d_conv2, BN folded): one contraction + shift + ReLU ----
    h_stack = jnp.concatenate(
        [h[:, h_off + d: h_off + d + g_out] for d in taps], axis=0)
    y = jnp.dot(w2_ref[...], h_stack, preferred_element_type=jnp.float32)
    o_ref[0] = jnp.maximum(y + s2_ref[...], 0.0).astype(o_ref.dtype)


def _pxp_kernel(x_ref, w_ref, s_ref, o_ref, *, taps, x_left, g_out):
    """Conv2D_pxp (k=3): relu(bn(conv3x3(x))), BN folded into w/s, one dot."""
    x = x_ref[0]                                              # (c_in, w_x) f32
    x_stack = jnp.concatenate(
        [x[:, x_left + d: x_left + d + g_out] for d in taps], axis=0)
    y = jnp.dot(w_ref[...], x_stack.astype(w_ref.dtype),
                preferred_element_type=jnp.float32)
    o_ref[0] = jnp.maximum(y + s_ref[...], 0.0).astype(o_ref.dtype)


# ----------------------------------------------------------------------------
# host-side layout / parameter plumbing (tiny arrays only)
# ----------------------------------------------------------------------------
def _to_strip(x_nchw, groups, geo):
    """NCHW -> pad ring -> flatten spatial -> fold n_per images into lanes."""
    n, c, h, w = x_nchw.shape
    n_per = n // groups
    p, slot = geo["p"], geo["slot"]
    xp = jnp.pad(x_nchw, ((0, 0), (0, 0), (1, 1), (1, 1)))
    xf = xp.reshape(n, c, p)
    xf = jnp.pad(xf, ((0, 0), (0, 0), (0, slot - p)))
    xf = xf.reshape(groups, n_per, c, slot).transpose(0, 2, 1, 3)
    xf = xf.reshape(groups, c, n_per * slot)
    right = geo["w_x"] - geo["x_left"] - n_per * slot
    return jnp.pad(xf, ((0, 0), (0, 0), (geo["x_left"], right)))


def _from_strip(out, n, c_out, h, w, geo):
    groups = out.shape[0]
    n_per = n // groups
    hp, wp, p, slot = geo["hp"], geo["wp"], geo["p"], geo["slot"]
    y = out.reshape(groups, c_out, n_per, slot).transpose(0, 2, 1, 3)
    y = y.reshape(n, c_out, slot)[:, :, :p].reshape(n, c_out, hp, wp)
    return y[:, :, 1:h + 1, 1:w + 1]


def _interior_mask_strip(h, w, n_per, geo):
    hp, wp, p, slot = geo["hp"], geo["wp"], geo["p"], geo["slot"]
    rok = (jnp.arange(hp) >= 1) & (jnp.arange(hp) <= h)
    cok = (jnp.arange(wp) >= 1) & (jnp.arange(wp) <= w)
    m = (rok[:, None] & cok[None, :]).astype(jnp.float32).reshape(p)
    strip = jnp.zeros((n_per, slot), jnp.float32).at[:, :p].set(m[None, :])
    strip = strip.reshape(n_per * slot)
    ext = jnp.zeros((geo["w_ext"],), jnp.float32)
    ext = ext.at[geo["h_off"]:geo["h_off"] + n_per * slot].set(strip)
    return ext.reshape(1, geo["w_ext"])


def _weight_mat(w_oihw):
    # (C_out, C_in, 3, 3) -> (C_out, 9*C_in), columns ordered tap-major, then C_in
    c_out, c_in = w_oihw.shape[0], w_oihw.shape[1]
    return jnp.transpose(w_oihw, (0, 2, 3, 1)).reshape(c_out, 9 * c_in)


def _convtranspose_to_conv_weight(w_iokk):
    # ConvTranspose2d (C_in, C_out, k, k), stride=1, pad=1  ==  Conv2d with
    # spatially flipped taps, weight (C_out, C_in, k, k), padding k-1-1 = 1.
    return jnp.transpose(jnp.flip(w_iokk, axis=(2, 3)), (1, 0, 2, 3))


def _bn_scale_shift(gamma, beta, mean, var, eps=_BN_EPS):
    scale = gamma / jnp.sqrt(var + eps)
    return scale, beta - mean * scale


# ----------------------------------------------------------------------------
# module-level ops
# ----------------------------------------------------------------------------
@functools.partial(jax.jit, static_argnames=("groups",))
def cc_module_forward(x_nchw, params, *, groups=1):
    """Registered decoder path: d_relu1(d_bn1(d_conv2(d_conv1(x))))."""
    n, c_in, h, w = x_nchw.shape
    n_per = n // groups
    geo = _geometry(h, w, n_per)
    c_mid = params["d_conv1_w"].shape[1]
    c_out = params["d_conv2_w"].shape[1]

    w1 = _convtranspose_to_conv_weight(params["d_conv1_w"])       # (32, 3, 3, 3)
    w2 = _convtranspose_to_conv_weight(params["d_conv2_w"])       # (3, 32, 3, 3)

    # fold BatchNorm2d(3) into layer-2 weight + shift (eval-mode running stats)
    scale, shift = _bn_scale_shift(params["d_bn1_gamma"], params["d_bn1_beta"],
                                   params["d_bn1_mean"], params["d_bn1_var"])
    w2 = w2 * scale[:, None, None, None]
    s2 = (params["d_conv2_b"] * scale + shift).reshape(c_out, 1).astype(jnp.float32)

    x_strip = _to_strip(x_nchw, groups, geo).astype(jnp.float32)
    w1_mat = _weight_mat(w1).astype(jnp.float32)                  # (32, 27) f32
    w2_mat = _weight_mat(w2).astype(jnp.bfloat16)                 # (3, 288) bf16
    b1 = params["d_conv1_b"].reshape(c_mid, 1).astype(jnp.float32)
    mask = _interior_mask_strip(h, w, n_per, geo)

    kern = functools.partial(_decoder_kernel, taps=geo["taps"],
                             x_left=geo["x_left"], h_off=geo["h_off"],
                             w_ext=geo["w_ext"], g_out=geo["g_out"])
    out = pl.pallas_call(
        kern,
        out_shape=jax.ShapeDtypeStruct((groups, c_out, geo["g_out"]), jnp.float32),
        grid_spec=pltpu.PrefetchScalarGridSpec(
            num_scalar_prefetch=0,
            grid=(groups,),
            in_specs=[
                pl.BlockSpec((1, c_in, geo["w_x"]), lambda i: (i, 0, 0)),
                # constant index maps -> weights / mask stay resident
                pl.BlockSpec((c_mid, 9 * c_in), lambda i: (0, 0)),
                pl.BlockSpec((c_mid, 1), lambda i: (0, 0)),
                pl.BlockSpec((1, geo["w_ext"]), lambda i: (0, 0)),
                pl.BlockSpec((c_out, 9 * c_mid), lambda i: (0, 0)),
                pl.BlockSpec((c_out, 1), lambda i: (0, 0)),
            ],
            out_specs=pl.BlockSpec((1, c_out, geo["g_out"]), lambda i: (i, 0, 0)),
        ),
        compiler_params=pltpu.CompilerParams(
            dimension_semantics=("parallel",),
            vmem_limit_bytes=32 * 1024 * 1024,
        ),
    )(x_strip, w1_mat, b1, mask, w2_mat, s2)

    return _from_strip(out, n, c_out, h, w, geo)


@functools.partial(jax.jit, static_argnames=("groups",))
def conv2d_pxp(x_nchw, pxp_params, *, groups=1):
    """Conv2D_pxp (k=3): relu(bn(conv3x3(x))) with BN folded into the weights."""
    n, c_in, h, w = x_nchw.shape
    n_per = n // groups
    geo = _geometry(h, w, n_per)
    c_out = pxp_params["conv_w"].shape[0]

    scale, shift = _bn_scale_shift(pxp_params["bn_gamma"], pxp_params["bn_beta"],
                                   pxp_params["bn_mean"], pxp_params["bn_var"])
    w_f = pxp_params["conv_w"] * scale[:, None, None, None]
    s_f = (pxp_params["conv_b"] * scale + shift).reshape(c_out, 1).astype(jnp.float32)

    x_strip = _to_strip(x_nchw, groups, geo).astype(jnp.float32)
    w_mat = _weight_mat(w_f).astype(jnp.bfloat16)

    kern = functools.partial(_pxp_kernel, taps=geo["taps"],
                             x_left=geo["x_left"], g_out=geo["g_out"])
    out = pl.pallas_call(
        kern,
        out_shape=jax.ShapeDtypeStruct((groups, c_out, geo["g_out"]), jnp.float32),
        grid_spec=pltpu.PrefetchScalarGridSpec(
            num_scalar_prefetch=0,
            grid=(groups,),
            in_specs=[
                pl.BlockSpec((1, c_in, geo["w_x"]), lambda i: (i, 0, 0)),
                pl.BlockSpec((c_out, 9 * c_in), lambda i: (0, 0)),
                pl.BlockSpec((c_out, 1), lambda i: (0, 0)),
            ],
            out_specs=pl.BlockSpec((1, c_out, geo["g_out"]), lambda i: (i, 0, 0)),
        ),
        compiler_params=pltpu.CompilerParams(
            dimension_semantics=("parallel",),
            vmem_limit_bytes=32 * 1024 * 1024,
        ),
    )(x_strip, w_mat, s_f)

    return _from_strip(out, n, c_out, h, w, geo)


# ----------------------------------------------------------------------------
# pure-JAX references (correctness cross-check)
# ----------------------------------------------------------------------------
def _ref_conv(x, w, b, pad):
    y = jax.lax.conv_general_dilated(
        x, w, window_strides=(1, 1), padding=[(pad, pad), (pad, pad)],
        dimension_numbers=("NCHW", "OIHW", "NCHW"))
    return y + b[None, :, None, None]


def _ref_cc_module(x, params):
    w1 = _convtranspose_to_conv_weight(params["d_conv1_w"])
    hmid = _ref_conv(x, w1, params["d_conv1_b"], 1)
    w2 = _convtranspose_to_conv_weight(params["d_conv2_w"])
    y = _ref_conv(hmid, w2, params["d_conv2_b"], 1)
    scale, shift = _bn_scale_shift(params["d_bn1_gamma"], params["d_bn1_beta"],
                                   params["d_bn1_mean"], params["d_bn1_var"])
    return jnp.maximum(y * scale[None, :, None, None] + shift[None, :, None, None], 0.0)


def _ref_conv2d_pxp(x, pp):
    scale, shift = _bn_scale_shift(pp["bn_gamma"], pp["bn_beta"],
                                   pp["bn_mean"], pp["bn_var"])
    y = _ref_conv(x, pp["conv_w"], pp["conv_b"], 1)
    return jnp.maximum(y * scale[None, :, None, None] + shift[None, :, None, None], 0.0)


# ----------------------------------------------------------------------------
# param init
# ----------------------------------------------------------------------------
def _init_params(key):
    ks = jax.random.split(key, 6)
    params = {
        # ConvTranspose2d weights are (C_in, C_out, k, k)
        "d_conv1_w": 0.1 * jax.random.normal(ks[0], (3, 32, 3, 3), jnp.float32),
        "d_conv1_b": 0.01 * jax.random.normal(ks[1], (32,), jnp.float32),
        "d_conv2_w": 0.1 * jax.random.normal(ks[2], (32, 3, 3, 3), jnp.float32),
        "d_conv2_b": 0.01 * jax.random.normal(ks[3], (3,), jnp.float32),
        # BatchNorm2d(3) fresh init
        "d_bn1_gamma": jnp.ones((3,), jnp.float32),
        "d_bn1_beta": jnp.zeros((3,), jnp.float32),
        "d_bn1_mean": jnp.zeros((3,), jnp.float32),
        "d_bn1_var": jnp.ones((3,), jnp.float32),
    }
    layer1_1 = {  # Conv2D_pxp(1, 32, 3)
        "conv_w": 0.1 * jax.random.normal(ks[4], (32, 1, 3, 3), jnp.float32),
        "conv_b": 0.01 * jax.random.normal(ks[5], (32,), jnp.float32),
        "bn_gamma": jnp.ones((32,), jnp.float32),
        "bn_beta": jnp.zeros((32,), jnp.float32),
        "bn_mean": jnp.zeros((32,), jnp.float32),
        "bn_var": jnp.ones((32,), jnp.float32),
    }
    return params, layer1_1


# ----------------------------------------------------------------------------
# main
# ----------------------------------------------------------------------------
if __name__ == "__main__":
    key = jax.random.PRNGKey(0)
    k_x, k_p = jax.random.split(key)
    x = jax.random.normal(k_x, (2, 3, 16, 16), jnp.float32)   # NCHW, like PyTorch
    params, layer1_1_params = _init_params(k_p)

    groups = _grid_groups(x.shape[0])   # 1 on v5e/v6e (batch folded into lanes),
                                        # n on multi-TC chips (v7x)

    # Registered decoder path of CC_Module (single fused Pallas kernel).
    y = jax.block_until_ready(cc_module_forward(x, params, groups=groups))
    assert y.shape == (2, 3, 16, 16), y.shape
    assert bool(jnp.all(y >= 0.0))
    y_ref = _ref_cc_module(x, params)
    assert bool(jnp.allclose(y, y_ref, rtol=1e-1, atol=1e-1)), \
        float(jnp.max(jnp.abs(y - y_ref)))

    # Dependent Conv2D_pxp block (layer1_1 flavor: 1 -> 32, k=3, pad=1) on channel 0.
    x1 = x[:, 0:1, :, :]
    z = jax.block_until_ready(conv2d_pxp(x1, layer1_1_params, groups=groups))
    assert z.shape == (2, 32, 16, 16), z.shape
    assert bool(jnp.all(z >= 0.0))
    z_ref = _ref_conv2d_pxp(x1, layer1_1_params)
    assert bool(jnp.allclose(z, z_ref, rtol=1e-1, atol=1e-1)), \
        float(jnp.max(jnp.abs(z - z_ref)))

    print("KERNEL_OK")
</pallas_src>

<mosaic_0001>
module attributes {stable_mosaic.version = 11 : i64} {
  func.func @_decoder_kernel(%arg0: i32, %arg1: memref<1x3x640xf32, #tpu.memory_space<vmem>>, %arg2: memref<32x27xf32, #tpu.memory_space<vmem>>, %arg3: memref<32x1xf32, #tpu.memory_space<vmem>>, %arg4: memref<1x512xf32, #tpu.memory_space<vmem>>, %arg5: memref<3x288xbf16, #tpu.memory_space<vmem>>, %arg6: memref<3x1xf32, #tpu.memory_space<vmem>>, %arg7: memref<1x3x384xf32, #tpu.memory_space<vmem>>) attributes {dimension_semantics = [#tpu.dimension_semantics<parallel>], iteration_bounds = array<i64: 2>, scalar_prefetch = 0 : i64, scratch_operands = 0 : i64, tpu.core_type = #tpu.core_type<tc>, window_params = [{transform_indices = @transform_0, window_bounds = array<i64: 1, 3, 640>}, {pipeline_mode = #tpu.pipeline_mode<synchronous>, transform_indices = @transform_1, window_bounds = array<i64: 32, 27>}, {pipeline_mode = #tpu.pipeline_mode<synchronous>, transform_indices = @transform_2, window_bounds = array<i64: 32, 1>}, {pipeline_mode = #tpu.pipeline_mode<synchronous>, transform_indices = @transform_3, window_bounds = array<i64: 1, 512>}, {pipeline_mode = #tpu.pipeline_mode<synchronous>, transform_indices = @transform_4, window_bounds = array<i64: 3, 288>}, {pipeline_mode = #tpu.pipeline_mode<synchronous>, transform_indices = @transform_5, window_bounds = array<i64: 3, 1>}, {transform_indices = @transform_6, window_bounds = array<i64: 1, 3, 384>}]} {
    %c0 = arith.constant 0 : index
    %c0_0 = arith.constant 0 : index
    %c0_1 = arith.constant 0 : index
    %0 = vector.load %arg1[%c0, %c0_0, %c0_1] : memref<1x3x640xf32, #tpu.memory_space<vmem>>, vector<1x3x640xf32>
    %1 = vector.shape_cast %0 : vector<1x3x640xf32> to vector<3x640xf32>
    %2 = vector.extract_strided_slice %1 {offsets = [0, 90], sizes = [3, 512], strides = [1, 1]} : vector<3x640xf32> to vector<3x512xf32>
    %3 = vector.extract_strided_slice %1 {offsets = [0, 91], sizes = [3, 512], strides = [1, 1]} : vector<3x640xf32> to vector<3x512xf32>
    %4 = vector.extract_strided_slice %1 {offsets = [0, 92], sizes = [3, 512], strides = [1, 1]} : vector<3x640xf32> to vector<3x512xf32>
    %5 = vector.extract_strided_slice %1 {offsets = [0, 108], sizes = [3, 512], strides = [1, 1]} : vector<3x640xf32> to vector<3x512xf32>
    %6 = vector.extract_strided_slice %1 {offsets = [0, 109], sizes = [3, 512], strides = [1, 1]} : vector<3x640xf32> to vector<3x512xf32>
    %7 = vector.extract_strided_slice %1 {offsets = [0, 110], sizes = [3, 512], strides = [1, 1]} : vector<3x640xf32> to vector<3x512xf32>
    %8 = vector.extract_strided_slice %1 {offsets = [0, 126], sizes = [3, 512], strides = [1, 1]} : vector<3x640xf32> to vector<3x512xf32>
    %9 = vector.extract_strided_slice %1 {offsets = [0, 127], sizes = [3, 512], strides = [1, 1]} : vector<3x640xf32> to vector<3x512xf32>
    %10 = vector.extract_strided_slice %1 {offsets = [0, 128], sizes = [3, 512], strides = [1, 1]} : vector<3x640xf32> to vector<3x512xf32>
    %11 = tpu.concatenate %2, %3, %4, %5, %6, %7, %8, %9, %10 in 0 : vector<3x512xf32>, vector<3x512xf32>, vector<3x512xf32>, vector<3x512xf32>, vector<3x512xf32>, vector<3x512xf32>, vector<3x512xf32>, vector<3x512xf32>, vector<3x512xf32> -> vector<27x512xf32>
    %c0_2 = arith.constant 0 : index
    %c0_3 = arith.constant 0 : index
    %12 = vector.load %arg2[%c0_2, %c0_3] : memref<32x27xf32, #tpu.memory_space<vmem>>, vector<32x27xf32>
    %cst = arith.constant dense<0.000000e+00> : vector<32x512xf32>
    %13 = tpu.matmul %12, %11, %cst {dimension_numbers = #tpu.dot_dimension_numbers<[1], [0], [0], [1], [0, 0, 1, 1], [], []>} : vector<32x27xf32>, vector<27x512xf32>, vector<32x512xf32> -> vector<32x512xf32>
    %c0_4 = arith.constant 0 : index
    %c0_5 = arith.constant 0 : index
    %14 = vector.load %arg3[%c0_4, %c0_5] : memref<32x1xf32, #tpu.memory_space<vmem>>, vector<32x1xf32>
    %15 = vector.broadcast %14 : vector<32x1xf32> to vector<32x512xf32>
    %16 = arith.addf %13, %15 : vector<32x512xf32>
    %c0_6 = arith.constant 0 : index
    %c0_7 = arith.constant 0 : index
    %17 = vector.load %arg4[%c0_6, %c0_7] : memref<1x512xf32, #tpu.memory_space<vmem>>, vector<1x512xf32>
    %18 = vector.broadcast %17 : vector<1x512xf32> to vector<32x512xf32>
    %19 = arith.mulf %16, %18 : vector<32x512xf32>
    %20 = arith.truncf %19 : vector<32x512xf32> to vector<32x512xbf16>
    %21 = vector.extract_strided_slice %20 {offsets = [0, 0], sizes = [32, 384], strides = [1, 1]} : vector<32x512xbf16> to vector<32x384xbf16>
    %22 = vector.extract_strided_slice %20 {offsets = [0, 1], sizes = [32, 384], strides = [1, 1]} : vector<32x512xbf16> to vector<32x384xbf16>
    %23 = vector.extract_strided_slice %20 {offsets = [0, 2], sizes = [32, 384], strides = [1, 1]} : vector<32x512xbf16> to vector<32x384xbf16>
    %24 = vector.extract_strided_slice %20 {offsets = [0, 18], sizes = [32, 384], strides = [1, 1]} : vector<32x512xbf16> to vector<32x384xbf16>
    %25 = vector.extract_strided_slice %20 {offsets = [0, 19], sizes = [32, 384], strides = [1, 1]} : vector<32x512xbf16> to vector<32x384xbf16>
    %26 = vector.extract_strided_slice %20 {offsets = [0, 20], sizes = [32, 384], strides = [1, 1]} : vector<32x512xbf16> to vector<32x384xbf16>
    %27 = vector.extract_strided_slice %20 {offsets = [0, 36], sizes = [32, 384], strides = [1, 1]} : vector<32x512xbf16> to vector<32x384xbf16>
    %28 = vector.extract_strided_slice %20 {offsets = [0, 37], sizes = [32, 384], strides = [1, 1]} : vector<32x512xbf16> to vector<32x384xbf16>
    %29 = vector.extract_strided_slice %20 {offsets = [0, 38], sizes = [32, 384], strides = [1, 1]} : vector<32x512xbf16> to vector<32x384xbf16>
    %30 = tpu.concatenate %21, %22, %23, %24, %25, %26, %27, %28, %29 in 0 : vector<32x384xbf16>, vector<32x384xbf16>, vector<32x384xbf16>, vector<32x384xbf16>, vector<32x384xbf16>, vector<32x384xbf16>, vector<32x384xbf16>, vector<32x384xbf16>, vector<32x384xbf16> -> vector<288x384xbf16>
    %c0_8 = arith.constant 0 : index
    %c0_9 = arith.constant 0 : index
    %31 = vector.load %arg5[%c0_8, %c0_9] : memref<3x288xbf16, #tpu.memory_space<vmem>>, vector<3x288xbf16>
    %cst_10 = arith.constant dense<0.000000e+00> : vector<3x384xf32>
    %32 = tpu.matmul %31, %30, %cst_10 {dimension_numbers = #tpu.dot_dimension_numbers<[1], [0], [0], [1], [0, 0, 1, 1], [], []>} : vector<3x288xbf16>, vector<288x384xbf16>, vector<3x384xf32> -> vector<3x384xf32>
    %c0_11 = arith.constant 0 : index
    %c0_12 = arith.constant 0 : index
    %33 = vector.load %arg6[%c0_11, %c0_12] : memref<3x1xf32, #tpu.memory_space<vmem>>, vector<3x1xf32>
    %34 = vector.broadcast %33 : vector<3x1xf32> to vector<3x384xf32>
    %35 = arith.addf %32, %34 : vector<3x384xf32>
    %cst_13 = arith.constant 0.000000e+00 : f32
    %36 = vector.broadcast %cst_13 : f32 to vector<3x384xf32>
    %37 = arith.maximumf %35, %36 : vector<3x384xf32>
    %c0_14 = arith.constant 0 : index
    %c0_15 = arith.constant 0 : index
    %c0_16 = arith.constant 0 : index
    %38 = vector.load %arg7[%c0_14, %c0_15, %c0_16] : memref<1x3x384xf32, #tpu.memory_space<vmem>>, vector<1x3x384xf32>
    %39 = vector.shape_cast %38 : vector<1x3x384xf32> to vector<3x384xf32>
    %40 = vector.shape_cast %37 : vector<3x384xf32> to vector<1x3x384xf32>
    tpu.vector_store %arg7[%c0_14, %c0_15, %c0_16], %40 {strides = array<i32>} : memref<1x3x384xf32, #tpu.memory_space<vmem>>, vector<1x3x384xf32>,
    return
  }
  func.func @transform_0(%arg0: i32) -> (i32, i32, i32) {
    %c0_i32 = arith.constant 0 : i32
    %c0_i32_0 = arith.constant 0 : i32
    %c0_i32_1 = arith.constant 0 : i32
    return %arg0, %c0_i32, %c0_i32_0 : i32, i32, i32
  }
  func.func @transform_1(%arg0: i32) -> (i32, i32) {
    %c0_i32 = arith.constant 0 : i32
    %c0_i32_0 = arith.constant 0 : i32
    %c0_i32_1 = arith.constant 0 : i32
    return %c0_i32, %c0_i32_0 : i32, i32
  }
  func.func @transform_2(%arg0: i32) -> (i32, i32) {
    %c0_i32 = arith.constant 0 : i32
    %c0_i32_0 = arith.constant 0 : i32
    %c0_i32_1 = arith.constant 0 : i32
    return %c0_i32, %c0_i32_0 : i32, i32
  }
  func.func @transform_3(%arg0: i32) -> (i32, i32) {
    %c0_i32 = arith.constant 0 : i32
    %c0_i32_0 = arith.constant 0 : i32
    %c0_i32_1 = arith.constant 0 : i32
    return %c0_i32, %c0_i32_0 : i32, i32
  }
  func.func @transform_4(%arg0: i32) -> (i32, i32) {
    %c0_i32 = arith.constant 0 : i32
    %c0_i32_0 = arith.constant 0 : i32
    %c0_i32_1 = arith.constant 0 : i32
    return %c0_i32, %c0_i32_0 : i32, i32
  }
  func.func @transform_5(%arg0: i32) -> (i32, i32) {
    %c0_i32 = arith.constant 0 : i32
    %c0_i32_0 = arith.constant 0 : i32
    %c0_i32_1 = arith.constant 0 : i32
    return %c0_i32, %c0_i32_0 : i32, i32
  }
  func.func @transform_6(%arg0: i32) -> (i32, i32, i32) {
    %c0_i32 = arith.constant 0 : i32
    %c0_i32_0 = arith.constant 0 : i32
    %c0_i32_1 = arith.constant 0 : i32
    return %arg0, %c0_i32, %c0_i32_0 : i32, i32, i32
  }
}

</mosaic_0001>

<llo_original>
// kernel: cc_module_forward.1
$region0: #{cc_module_forward.1}
  #allocation0 [shape = 'u32[]', space=smem, size = 0x4, offset = 0x4, fixed_abs, tag = 'smem constant byte address 0x4 - core index']
  #allocation1 [shape = 'u32[72,128]{1,0:T(1,128)}', space=vmem, size = 0x9000, scoped, tag = 'internal scratch']
  %s0 = inlined_call_operand.vmem [shape: f32[2,3,640], index: 0, kind: input, shape index: {}]
  %s1 = inlined_call_operand.vmem [shape: f32[32,27], index: 1, kind: input, shape index: {}]
  %s2 = inlined_call_operand.vmem [shape: f32[32,1], index: 2, kind: input, shape index: {}]
  %s3 = inlined_call_operand.vmem [shape: f32[1,512], index: 3, kind: input, shape index: {}]
  %s4 = inlined_call_operand.vmem [shape: bf16[3,288], index: 4, kind: input, shape index: {}]
  %s5 = inlined_call_operand.vmem [shape: f32[3,1], index: 5, kind: input, shape index: {}]
  %s6 = inlined_call_operand.vmem [shape: f32[2,3,384], index: 6, kind: output, shape index: {}]
  %s7 = sld [smem:[#allocation0]]
  $region57: #{cc_module_forward.1} parent=0
    _
  %s9 = ssub.s32 1, %s7
  %s10 = scalar_select 0, %s9, %s7
  loop: start=0, step=1, limit=4
  $region2: #{cc_module_forward.1} parent=0 // loop_pre_header
    _
  $region3: #{cc_module_forward.1} parent=0 // loop_header
    %s12 = sphi 0, %s16
    %p13 = scmp.ge.s32.totalorder %s12, 4
    %s22 = sphi 0, %s24
    %s25 = sphi 0, %s22
    %s26 = sphi 0, %s25
    %s42 = sphi 0, %s26
    %s46 = sphi 0, %s46
    %s48 = sphi 0, %s46
    %s49 = sphi 0, %s48
    %s63 = sphi 0, %s49
    %s67 = sphi 0, %s67
    %s69 = sphi 0, %s67
    %s70 = sphi 0, %s69
    %s84 = sphi 0, %s70
    %s88 = sphi 0, %s88
    %s90 = sphi 0, %s88
    %s91 = sphi 0, %s90
    %s105 = sphi 0, %s91
    %s109 = sphi 0, %s109
    %s111 = sphi 0, %s109
    %s112 = sphi 0, %s111
    %s126 = sphi 0, %s112
    %s130 = sphi 0, %s130
    %s132 = sphi 0, %s130
    %s133 = sphi 0, %s132
    %s147 = sphi 0, %s133
    %s153 = sphi 0, %s155
    %s156 = sphi 0, %s153
    %s157 = sphi 0, %s156
    %s173 = sphi 0, %s157
  $region4: #{cc_module_forward.1} parent=0 // loop_header_branch
    %15 = sbr.rel (%p13) target = $region8
  $region5: #{cc_module_forward.1} parent=0 // loop_body
    %s17 = ssub.s32 %s12, 1
    %s18 = ssub.s32 %s12, 2
    %s19 = sadd.s32 %s12, 1
    %s20 = ssub.s32 %s12, %s19
    %p21 = scmp.eq.s32.totalorder %s20, 0
    %s23 = sadd.s32 %s22, 1
    %s24 = scalar_select %p21, %s22, %s23
    %p27 = pneg %p21
    %p28 = scmp.eq.s32.totalorder %s12, 1
    %p29 = por %p27, %p28
    %p30 = scmp.ne.s32.totalorder %s22, %s25
    %p31 = scmp.eq.s32.totalorder %s12, 0
    %p32 = por %p30, %p31
    %p33 = scmp.ne.s32.totalorder %s22, %s25
    %p34 = scmp.eq.s32.totalorder %s17, 1
    %p35 = por %p33, %p34
    %p36 = scmp.ne.s32.totalorder %s25, %s26
    %p37 = scmp.eq.s32.totalorder %s17, 0
    %p38 = por %p36, %p37
    %p39 = scmp.ne.s32.totalorder %s25, %s26
    %p40 = scmp.eq.s32.totalorder %s18, 1
    %p41 = por %p39, %p40
    %p43 = scmp.ne.s32.totalorder %s26, %s42
    %p44 = scmp.eq.s32.totalorder %s18, 0
    %p45 = por %p43, %p44
    %s47 = sadd.s32 %s46, 1
    %p50 = scmp.eq.s32.totalorder %s12, 1
    %p51 = scmp.ne.s32.totalorder %s46, %s48
    %p52 = scmp.eq.s32.totalorder %s12, 0
    %p53 = por %p51, %p52
    %p54 = scmp.ne.s32.totalorder %s46, %s48
    %p55 = scmp.eq.s32.totalorder %s17, 1
    %p56 = por %p54, %p55
    %p57 = scmp.ne.s32.totalorder %s48, %s49
    %p58 = scmp.eq.s32.totalorder %s17, 0
    %p59 = por %p57, %p58
    %p60 = scmp.ne.s32.totalorder %s48, %s49
    %p61 = scmp.eq.s32.totalorder %s18, 1
    %p62 = por %p60, %p61
    %p64 = scmp.ne.s32.totalorder %s49, %s63
    %p65 = scmp.eq.s32.totalorder %s18, 0
    %p66 = por %p64, %p65
    %s68 = sadd.s32 %s67, 1
    %p71 = scmp.eq.s32.totalorder %s12, 1
    %p72 = scmp.ne.s32.totalorder %s67, %s69
    %p73 = scmp.eq.s32.totalorder %s12, 0
    %p74 = por %p72, %p73
    %p75 = scmp.ne.s32.totalorder %s67, %s69
    %p76 = scmp.eq.s32.totalorder %s17, 1
    %p77 = por %p75, %p76
    %p78 = scmp.ne.s32.totalorder %s69, %s70
    %p79 = scmp.eq.s32.totalorder %s17, 0
    %p80 = por %p78, %p79
    %p81 = scmp.ne.s32.totalorder %s69, %s70
    %p82 = scmp.eq.s32.totalorder %s18, 1
    %p83 = por %p81, %p82
    %p85 = scmp.ne.s32.totalorder %s70, %s84
    %p86 = scmp.eq.s32.totalorder %s18, 0
    %p87 = por %p85, %p86
    %s89 = sadd.s32 %s88, 1
    %p92 = scmp.eq.s32.totalorder %s12, 1
    %p93 = scmp.ne.s32.totalorder %s88, %s90
    %p94 = scmp.eq.s32.totalorder %s12, 0
    %p95 = por %p93, %p94
    %p96 = scmp.ne.s32.totalorder %s88, %s90
    %p97 = scmp.eq.s32.totalorder %s17, 1
    %p98 = por %p96, %p97
    %p99 = scmp.ne.s32.totalorder %s90, %s91
    %p100 = scmp.eq.s32.totalorder %s17, 0
    %p101 = por %p99, %p100
    %p102 = scmp.ne.s32.totalorder %s90, %s91
    %p103 = scmp.eq.s32.totalorder %s18, 1
    %p104 = por %p102, %p103
    %p106 = scmp.ne.s32.totalorder %s91, %s105
    %p107 = scmp.eq.s32.totalorder %s18, 0
    %p108 = por %p106, %p107
    %s110 = sadd.s32 %s109, 1
    %p113 = scmp.eq.s32.totalorder %s12, 1
    %p114 = scmp.ne.s32.totalorder %s109, %s111
    %p115 = scmp.eq.s32.totalorder %s12, 0
    %p116 = por %p114, %p115
    %p117 = scmp.ne.s32.totalorder %s109, %s111
    %p118 = scmp.eq.s32.totalorder %s17, 1
    %p119 = por %p117, %p118
    %p120 = scmp.ne.s32.totalorder %s111, %s112
    %p121 = scmp.eq.s32.totalorder %s17, 0
    %p122 = por %p120, %p121
    %p123 = scmp.ne.s32.totalorder %s111, %s112
    %p124 = scmp.eq.s32.totalorder %s18, 1
    %p125 = por %p123, %p124
    %p127 = scmp.ne.s32.totalorder %s112, %s126
    %p128 = scmp.eq.s32.totalorder %s18, 0
    %p129 = por %p127, %p128
    %s131 = sadd.s32 %s130, 1
    %p134 = scmp.eq.s32.totalorder %s12, 1
    %p135 = scmp.ne.s32.totalorder %s130, %s132
    %p136 = scmp.eq.s32.totalorder %s12, 0
    %p137 = por %p135, %p136
    %p138 = scmp.ne.s32.totalorder %s130, %s132
    %p139 = scmp.eq.s32.totalorder %s17, 1
    %p140 = por %p138, %p139
    %p141 = scmp.ne.s32.totalorder %s132, %s133
    %p142 = scmp.eq.s32.totalorder %s17, 0
    %p143 = por %p141, %p142
    %p144 = scmp.ne.s32.totalorder %s132, %s133
    %p145 = scmp.eq.s32.totalorder %s18, 1
    %p146 = por %p144, %p145
    %p148 = scmp.ne.s32.totalorder %s133, %s147
    %p149 = scmp.eq.s32.totalorder %s18, 0
    %p150 = por %p148, %p149
    %s151 = ssub.s32 %s12, %s19
    %p152 = scmp.eq.s32.totalorder %s151, 0
    %s154 = sadd.s32 %s153, 1
    %s155 = scalar_select %p152, %s153, %s154
    %p158 = pneg %p152
    %p159 = scmp.eq.s32.totalorder %s12, 1
    %p160 = por %p158, %p159
    %p161 = scmp.ne.s32.totalorder %s153, %s156
    %p162 = scmp.eq.s32.totalorder %s12, 0
    %p163 = por %p161, %p162
    %p164 = scmp.ne.s32.totalorder %s153, %s156
    %p165 = scmp.eq.s32.totalorder %s17, 1
    %p166 = por %p164, %p165
    %p167 = scmp.ne.s32.totalorder %s156, %s157
    %p168 = scmp.eq.s32.totalorder %s17, 0
    %p169 = por %p167, %p168
    %p170 = scmp.ne.s32.totalorder %s156, %s157
    %p171 = scmp.eq.s32.totalorder %s18, 1
    %p172 = por %p170, %p171
    %p174 = scmp.ne.s32.totalorder %s157, %s173
    %p175 = scmp.eq.s32.totalorder %s18, 0
    %p176 = por %p174, %p175
    %p177 = scmp.le.s32.totalorder 1, %s12
    %p178 = scmp.lt.s32.totalorder %s12, 3
    %p179 = pnand %p177, %p178
    %p180 = pneg %p179
    // Predicated region
    $region9: #{cc_module_forward.1} parent=5 // pred_check
      _
    $region10: #{cc_module_forward.1} parent=5 // pred_check_branch
      %182 = sbr.rel (%p179) target = $region12
    $region11: #{cc_module_forward.1} parent=5 // pred_region
      %s183 = ssub.s32 %s12, 1
      // Predicated region
      $region13: #{cc_module_forward.1} parent=11 // pred_check
        %p184 = pneg %p59
      $region14: #{cc_module_forward.1} parent=11 // pred_check_branch
        %186 = sbr.rel (%p184) target = $region16
      $region15: #{cc_module_forward.1} parent=11 // pred_region
        _
      $region16: #{cc_module_forward.1} parent=11 // pred_fallthru
        _
      // Predicated region
      $region17: #{cc_module_forward.1} parent=11 // pred_check
        %p187 = pneg %p80
      $region18: #{cc_module_forward.1} parent=11 // pred_check_branch
        %189 = sbr.rel (%p187) target = $region20
      $region19: #{cc_module_forward.1} parent=11 // pred_region
        _
      $region20: #{cc_module_forward.1} parent=11 // pred_fallthru
        _
      // Predicated region
      $region21: #{cc_module_forward.1} parent=11 // pred_check
        %p190 = pneg %p101
      $region22: #{cc_module_forward.1} parent=11 // pred_check_branch
        %192 = sbr.rel (%p190) target = $region24
      $region23: #{cc_module_forward.1} parent=11 // pred_region
        _
      $region24: #{cc_module_forward.1} parent=11 // pred_fallthru
        _
      // Predicated region
      $region25: #{cc_module_forward.1} parent=11 // pred_check
        %p193 = pneg %p122
      $region26: #{cc_module_forward.1} parent=11 // pred_check_branch
        %195 = sbr.rel (%p193) target = $region28
      $region27: #{cc_module_forward.1} parent=11 // pred_region
        _
      $region28: #{cc_module_forward.1} parent=11 // pred_fallthru
        _
      // Predicated region
      $region29: #{cc_module_forward.1} parent=11 // pred_check
        %p196 = pneg %p143
      $region30: #{cc_module_forward.1} parent=11 // pred_check_branch
        %198 = sbr.rel (%p196) target = $region32
      $region31: #{cc_module_forward.1} parent=11 // pred_region
        _
      $region32: #{cc_module_forward.1} parent=11 // pred_fallthru
        _
    $region12: #{cc_module_forward.1} parent=5 // pred_fallthru
      _
    %p199 = scmp.lt.s32.totalorder %s12, 2
    // Predicated region
    $region33: #{cc_module_forward.1} parent=5 // pred_check
      %p200 = pneg %p199
    $region34: #{cc_module_forward.1} parent=5 // pred_check_branch
      %202 = sbr.rel (%p200) target = $region36
    $region35: #{cc_module_forward.1} parent=5 // pred_region
      // Predicated region
      $region37: #{cc_module_forward.1} parent=35 // pred_check
        %p203 = pneg %p32
      $region38: #{cc_module_forward.1} parent=35 // pred_check_branch
        %205 = sbr.rel (%p203) target = $region40
      $region39: #{cc_module_forward.1} parent=35 // pred_region
        %p206 = scmp.lt.s32.totalorder %s12, 1
        %s207 = scalar_select %p206, %s12, 1
        %s208 = smul.addr %s207, 5
        %s209 = smul.addr %s208, 4
        %s210 = scalar_lea.vmem %s0, %s209
      $region40: #{cc_module_forward.1} parent=35 // pred_fallthru
        _
    $region36: #{cc_module_forward.1} parent=5 // pred_fallthru
      _
    %p211 = scmp.le.s32.totalorder 1, %s12
    %p212 = scmp.lt.s32.totalorder %s12, 3
    %p213 = pnand %p211, %p212
    %p214 = pneg %p213
    // Predicated region
    $region41: #{cc_module_forward.1} parent=5 // pred_check
      _
    $region42: #{cc_module_forward.1} parent=5 // pred_check_branch
      %216 = sbr.rel (%p213) target = $region44
    $region43: #{cc_module_forward.1} parent=5 // pred_region
      %s217 = ssub.s32 %s12, 1
      %p218 = scmp.lt.s32.totalorder %s17, 1
      %s219 = scalar_select %p218, %s17, 1
      %s220 = smul.addr %s219, 5
      %s221 = smul.addr %s220, 4
      %s222 = scalar_lea.vmem %s0, %s221
      %p223 = pneg %p38
      %p224 = pneg %p35
      %p225 = pneg %p59
      %p226 = pneg %p56
      %p227 = pneg %p80
      %p228 = pneg %p77
      %p229 = pneg %p101
      %p230 = pneg %p98
      %p231 = pneg %p122
      %p232 = pneg %p119
      %p233 = pneg %p143
      %p234 = pneg %p140
      %p235 = pneg %p169
      %p236 = pneg %p166
      %p237 = scmp.lt.s32.totalorder %s17, 1
      %s238 = scalar_select %p237, %s17, 1
      %s239 = smul.addr %s238, 3
      %s240 = smul.addr %s239, 4
      %s241 = scalar_lea.vmem %s6, %s240
      %p242 = scmp.lt.s32.totalorder %s17, 1
      %s243 = scalar_select %p242, %s17, 1
      %s244 = smul.addr %s243, 5
      %s245 = smul.addr %s244, 4
      %s246 = scalar_lea.vmem %s0, %s245
      %p247 = scmp.lt.s32.totalorder %s17, 1
      %s248 = scalar_select %p247, %s17, 1
      %s249 = smul.addr %s248, 3
      %s250 = smul.addr %s249, 4
      %s251 = scalar_lea.vmem %s6, %s250
      %v253 = vld [vmem:[%s246] sm:$0x77]
      %v254 = vld [vmem:[%s246 + $0x8] sm:$0x77]
      %v255 = vld [vmem:[%s246 + $0x10] sm:$0x7]
      %259 = vst [vmem:[#allocation1] ss:$2 sm:$0xff] %v253
      %s260 = scalar_lea.vmem [#allocation1], 16
      %261 = vst [vmem:[%s260] ss:$2 sm:$0xff] %v254
      %s262 = scalar_lea.vmem [#allocation1], 32
      %263 = vst [vmem:[%s262] ss:$2 sm:$0xff] %v255
      %v264 = vld.sshfl [vmem:[#allocation1] sm:$0xff pattern:$0x75316420]
      %v265 = vld.sshfl [vmem:[#allocation1 + $0x8] sm:$0xff pattern:$0x75316420]
      %v266 = vld.sshfl [vmem:[#allocation1 + $0x10] sm:$0xff pattern:$0x75316420]
      %v267 = vld.sshfl [vmem:[#allocation1 + $0x18] sm:$0xff pattern:$0x75316420]
      %v268 = vld.sshfl [vmem:[#allocation1 + $0x20] sm:$0xff pattern:$0x75316420]
      %274 = vst [vmem:[#allocation1] ss:$2 sm:$0xff] %v253
      %s275 = scalar_lea.vmem [#allocation1], 16
      %276 = vst [vmem:[%s275] ss:$2 sm:$0xff] %v254
      %s277 = scalar_lea.vmem [#allocation1], 32
      %278 = vst [vmem:[%s277] ss:$2 sm:$0xff] %v255
      %v279 = vld.sshfl [vmem:[#allocation1] sm:$0xff pattern:$0x75316420]
      %v280 = vld.sshfl [vmem:[#allocation1 + $0x8] sm:$0xff pattern:$0x75316420]
      %v281 = vld.sshfl [vmem:[#allocation1 + $0x10] sm:$0xff pattern:$0x75316420]
      %v282 = vld.sshfl [vmem:[#allocation1 + $0x18] sm:$0xff pattern:$0x75316420]
      %v283 = vld.sshfl [vmem:[#allocation1 + $0x20] sm:$0xff pattern:$0x75316420]
      %v284 = vrot.slane %v279, 5
      %v285 = vrot.slane %v280, 5
      %v286 = vrot.slane %v281, 5
      %v287 = vrot.slane %v282, 5
      %v288 = vrot.slane %v283, 5
      %289 = vrot.lane.b32.xlu0 %v284, 127
      %v290 = vpop.permute.xlu0 %289
      %291 = vrot.lane.b32.xlu0 %v285, 127
      %v292 = vpop.permute.xlu0 %291
      %293 = vrot.lane.b32.xlu0 %v286, 127
      %v294 = vpop.permute.xlu0 %293
      %295 = vrot.lane.b32.xlu0 %v287, 127
      %v296 = vpop.permute.xlu0 %295
      %297 = vrot.lane.b32.xlu0 %v288, 127
      %v298 = vpop.permute.xlu0 %297
      %vm299 = vcmask 1039360
      %v300 = vsel %vm299, %v290, %v292
      %v301 = vsel %vm299, %v292, %v294
      %v302 = vsel %vm299, %v294, %v296
      %v303 = vsel %vm299, %v296, %v298
      %309 = vst [vmem:[#allocation1] ss:$2 sm:$0xff] %v253
      %s310 = scalar_lea.vmem [#allocation1], 16
      %311 = vst [vmem:[%s310] ss:$2 sm:$0xff] %v254
      %s312 = scalar_lea.vmem [#allocation1], 32
      %313 = vst [vmem:[%s312] ss:$2 sm:$0xff] %v255
      %v314 = vld.sshfl [vmem:[#allocation1] sm:$0xff pattern:$0x75316420]
      %v315 = vld.sshfl [vmem:[#allocation1 + $0x8] sm:$0xff pattern:$0x75316420]
      %v316 = vld.sshfl [vmem:[#allocation1 + $0x10] sm:$0xff pattern:$0x75316420]
      %v317 = vld.sshfl [vmem:[#allocation1 + $0x18] sm:$0xff pattern:$0x75316420]
      %v318 = vld.sshfl [vmem:[#allocation1 + $0x20] sm:$0xff pattern:$0x75316420]
      %v319 = vrot.slane %v314, 2
      %v320 = vrot.slane %v315, 2
      %v321 = vrot.slane %v316, 2
      %v322 = vrot.slane %v317, 2
      %v323 = vrot.slane %v318, 2
      %324 = vrot.lane.b32.xlu0 %v319, 126
      %v325 = vpop.permute.xlu0 %324
      %326 = vrot.lane.b32.xlu0 %v320, 126
      %v327 = vpop.permute.xlu0 %326
      %328 = vrot.lane.b32.xlu0 %v321, 126
      %v329 = vpop.permute.xlu0 %328
      %330 = vrot.lane.b32.xlu0 %v322, 126
      %v331 = vpop.permute.xlu0 %330
      %332 = vrot.lane.b32.xlu0 %v323, 126
      %v333 = vpop.permute.xlu0 %332
      %vm334 = vcmask 1031168
      %v335 = vsel %vm334, %v325, %v327
      %v336 = vsel %vm334, %v327, %v329
      %v337 = vsel %vm334, %v329, %v331
      %v338 = vsel %vm334, %v331, %v333
      %344 = vst [vmem:[#allocation1] ss:$2 sm:$0xff] %v253
      %s345 = scalar_lea.vmem [#allocation1], 16
      %346 = vst [vmem:[%s345] ss:$2 sm:$0xff] %v254
      %s347 = scalar_lea.vmem [#allocation1], 32
      %348 = vst [vmem:[%s347] ss:$2 sm:$0xff] %v255
      %v349 = vld.sshfl [vmem:[#allocation1] sm:$0xff pattern:$0x75316420]
      %v350 = vld.sshfl [vmem:[#allocation1 + $0x8] sm:$0xff pattern:$0x75316420]
      %v351 = vld.sshfl [vmem:[#allocation1 + $0x10] sm:$0xff pattern:$0x75316420]
      %v352 = vld.sshfl [vmem:[#allocation1 + $0x18] sm:$0xff pattern:$0x75316420]
      %v353 = vld.sshfl [vmem:[#allocation1 + $0x20] sm:$0xff pattern:$0x75316420]
      %v354 = vrot.slane %v349, 7
      %v355 = vrot.slane %v350, 7
      %v356 = vrot.slane %v351, 7
      %v357 = vrot.slane %v352, 7
      %v358 = vrot.slane %v353, 7
      %359 = vrot.lane.b32.xlu0 %v354, 110
      %v360 = vpop.permute.xlu0 %359
      %361 = vrot.lane.b32.xlu0 %v355, 110
      %v362 = vpop.permute.xlu0 %361
      %363 = vrot.lane.b32.xlu0 %v356, 110
      %v364 = vpop.permute.xlu0 %363
      %365 = vrot.lane.b32.xlu0 %v357, 110
      %v366 = vpop.permute.xlu0 %365
      %367 = vrot.lane.b32.xlu0 %v358, 110
      %v368 = vpop.permute.xlu0 %367
      %vm369 = vcmask 900096
      %v370 = vsel %vm369, %v360, %v362
      %v371 = vsel %vm369, %v362, %v364
      %v372 = vsel %vm369, %v364, %v366
      %v373 = vsel %vm369, %v366, %v368
      %s379 = scalar_lea.vmem [#allocation1], 1
      %380 = vst [vmem:[%s379] ss:$2 sm:$0xff] %v253
      %s381 = scalar_lea.vmem [#allocation1], 17
      %382 = vst [vmem:[%s381] ss:$2 sm:$0xff] %v254
      %s383 = scalar_lea.vmem [#allocation1], 33
      %384 = vst [vmem:[%s383] ss:$2 sm:$0xff] %v255
      %v385 = vld.sshfl [vmem:[#allocation1] sm:$0xff pattern:$0x75316420]
      %v386 = vld.sshfl [vmem:[#allocation1 + $0x8] sm:$0xff pattern:$0x75316420]
      %v387 = vld.sshfl [vmem:[#allocation1 + $0x10] sm:$0xff pattern:$0x75316420]
      %v388 = vld.sshfl [vmem:[#allocation1 + $0x18] sm:$0xff pattern:$0x75316420]
      %v389 = vld.sshfl [vmem:[#allocation1 + $0x20] sm:$0xff pattern:$0x75316420]
      %390 = vrot.lane.b32.xlu0 %v385, 109
      %v391 = vpop.permute.xlu0 %390
      %392 = vrot.lane.b32.xlu0 %v386, 109
      %v393 = vpop.permute.xlu0 %392
      %394 = vrot.lane.b32.xlu0 %v387, 109
      %v395 = vpop.permute.xlu0 %394
      %396 = vrot.lane.b32.xlu0 %v388, 109
      %v397 = vpop.permute.xlu0 %396
      %398 = vrot.lane.b32.xlu0 %v389, 109
      %v399 = vpop.permute.xlu0 %398
      %vm400 = vcmask 891904
      %v401 = vsel %vm400, %v391, %v393
      %v402 = vsel %vm400, %v393, %v395
      %v403 = vsel %vm400, %v395, %v397
      %v404 = vsel %vm400, %v397, %v399
      %410 = vst [vmem:[#allocation1] ss:$2 sm:$0xff] %v253
      %s411 = scalar_lea.vmem [#allocation1], 16
      %412 = vst [vmem:[%s411] ss:$2 sm:$0xff] %v254
      %s413 = scalar_lea.vmem [#allocation1], 32
      %414 = vst [vmem:[%s413] ss:$2 sm:$0xff] %v255
      %v415 = vld.sshfl [vmem:[#allocation1] sm:$0xff pattern:$0x75316420]
      %v416 = vld.sshfl [vmem:[#allocation1 + $0x8] sm:$0xff pattern:$0x75316420]
      %v417 = vld.sshfl [vmem:[#allocation1 + $0x10] sm:$0xff pattern:$0x75316420]
      %v418 = vld.sshfl [vmem:[#allocation1 + $0x18] sm:$0xff pattern:$0x75316420]
      %v419 = vld.sshfl [vmem:[#allocation1 + $0x20] sm:$0xff pattern:$0x75316420]
      %v420 = vrot.slane %v415, 1
      %v421 = vrot.slane %v416, 1
      %v422 = vrot.slane %v417, 1
      %v423 = vrot.slane %v418, 1
      %v424 = vrot.slane %v419, 1
      %425 = vrot.lane.b32.xlu0 %v420, 108
      %v426 = vpop.permute.xlu0 %425
      %427 = vrot.lane.b32.xlu0 %v421, 108
      %v428 = vpop.permute.xlu0 %427
      %429 = vrot.lane.b32.xlu0 %v422, 108
      %v430 = vpop.permute.xlu0 %429
      %431 = vrot.lane.b32.xlu0 %v423, 108
      %v432 = vpop.permute.xlu0 %431
      %433 = vrot.lane.b32.xlu0 %v424, 108
      %v434 = vpop.permute.xlu0 %433
      %vm435 = vcmask 883712
      %v436 = vsel %vm435, %v426, %v428
      %v437 = vsel %vm435, %v428, %v430
      %v438 = vsel %vm435, %v430, %v432
      %v439 = vsel %vm435, %v432, %v434
      %445 = vst [vmem:[#allocation1] ss:$2 sm:$0xff] %v253
      %s446 = scalar_lea.vmem [#allocation1], 16
      %447 = vst [vmem:[%s446] ss:$2 sm:$0xff] %v254
      %s448 = scalar_lea.vmem [#allocation1], 32
      %449 = vst [vmem:[%s448] ss:$2 sm:$0xff] %v255
      %v450 = vld.sshfl [vmem:[#allocation1] sm:$0xff pattern:$0x75316420]
      %v451 = vld.sshfl [vmem:[#allocation1 + $0x8] sm:$0xff pattern:$0x75316420]
      %v452 = vld.sshfl [vmem:[#allocation1 + $0x10] sm:$0xff pattern:$0x75316420]
      %v453 = vld.sshfl [vmem:[#allocation1 + $0x18] sm:$0xff pattern:$0x75316420]
      %v454 = vld.sshfl [vmem:[#allocation1 + $0x20] sm:$0xff pattern:$0x75316420]
      %v455 = vrot.slane %v450, 6
      %v456 = vrot.slane %v451, 6
      %v457 = vrot.slane %v452, 6
      %v458 = vrot.slane %v453, 6
      %v459 = vrot.slane %v454, 6
      %460 = vrot.lane.b32.xlu0 %v455, 92
      %v461 = vpop.permute.xlu0 %460
      %462 = vrot.lane.b32.xlu0 %v456, 92
      %v463 = vpop.permute.xlu0 %462
      %464 = vrot.lane.b32.xlu0 %v457, 92
      %v465 = vpop.permute.xlu0 %464
      %466 = vrot.lane.b32.xlu0 %v458, 92
      %v467 = vpop.permute.xlu0 %466
      %468 = vrot.lane.b32.xlu0 %v459, 92
      %v469 = vpop.permute.xlu0 %468
      %vm470 = vcmask 752640
      %v471 = vsel %vm470, %v461, %v463
      %v472 = vsel %vm470, %v463, %v465
      %v473 = vsel %vm470, %v465, %v467
      %v474 = vsel %vm470, %v467, %v469
      %480 = vst [vmem:[#allocation1] ss:$2 sm:$0xff] %v253
      %s481 = scalar_lea.vmem [#allocation1], 16
      %482 = vst [vmem:[%s481] ss:$2 sm:$0xff] %v254
      %s483 = scalar_lea.vmem [#allocation1], 32
      %484 = vst [vmem:[%s483] ss:$2 sm:$0xff] %v255
      %v485 = vld.sshfl [vmem:[#allocation1] sm:$0xff pattern:$0x75316420]
      %v486 = vld.sshfl [vmem:[#allocation1 + $0x8] sm:$0xff pattern:$0x75316420]
      %v487 = vld.sshfl [vmem:[#allocation1 + $0x10] sm:$0xff pattern:$0x75316420]
      %v488 = vld.sshfl [vmem:[#allocation1 + $0x18] sm:$0xff pattern:$0x75316420]
      %v489 = vld.sshfl [vmem:[#allocation1 + $0x20] sm:$0xff pattern:$0x75316420]
      %v490 = vrot.slane %v485, 3
      %v491 = vrot.slane %v486, 3
      %v492 = vrot.slane %v487, 3
      %v493 = vrot.slane %v488, 3
      %v494 = vrot.slane %v489, 3
      %495 = vrot.lane.b32.xlu0 %v490, 91
      %v496 = vpop.permute.xlu0 %495
      %497 = vrot.lane.b32.xlu0 %v491, 91
      %v498 = vpop.permute.xlu0 %497
      %499 = vrot.lane.b32.xlu0 %v492, 91
      %v500 = vpop.permute.xlu0 %499
      %501 = vrot.lane.b32.xlu0 %v493, 91
      %v502 = vpop.permute.xlu0 %501
      %503 = vrot.lane.b32.xlu0 %v494, 91
      %v504 = vpop.permute.xlu0 %503
      %vm505 = vcmask 744448
      %v506 = vsel %vm505, %v496, %v498
      %v507 = vsel %vm505, %v498, %v500
      %v508 = vsel %vm505, %v500, %v502
      %v509 = vsel %vm505, %v502, %v504
      %515 = vst [vmem:[#allocation1] ss:$2 sm:$0xff] %v253
      %s516 = scalar_lea.vmem [#allocation1], 16
      %517 = vst [vmem:[%s516] ss:$2 sm:$0xff] %v254
      %s518 = scalar_lea.vmem [#allocation1], 32
      %519 = vst [vmem:[%s518] ss:$2 sm:$0xff] %v255
      %v520 = vld.sshfl [vmem:[#allocation1 + $0x8] sm:$0xff pattern:$0x75316420]
      %v521 = vld.sshfl [vmem:[#allocation1 + $0x10] sm:$0xff pattern:$0x75316420]
      %v522 = vld.sshfl [vmem:[#allocation1 + $0x18] sm:$0xff pattern:$0x75316420]
      %v523 = vld.sshfl [vmem:[#allocation1 + $0x20] sm:$0xff pattern:$0x75316420]
      %524 = vrot.lane.b32.xlu0 %v520, 90
      %v525 = vpop.permute.xlu0 %524
      %526 = vrot.lane.b32.xlu0 %v521, 90
      %v527 = vpop.permute.xlu0 %526
      %528 = vrot.lane.b32.xlu0 %v522, 90
      %v529 = vpop.permute.xlu0 %528
      %530 = vrot.lane.b32.xlu0 %v523, 90
      %v531 = vpop.permute.xlu0 %530
      %vm532 = vcmask 736256
      %v533 = vsel %vm532, %v525, %v527
      %v534 = vsel %vm532, %v527, %v529
      %v535 = vsel %vm532, %v529, %v531
      %vm536 = vcmask 1042432
      %v537 = vsel %vm536, %v264, %v300
      %v538 = vsel %vm536, %v265, %v301
      %v539 = vsel %vm536, %v266, %v302
      %v540 = vsel %vm536, %v267, %v303
      %v541 = vsel %vm536, %v268, %v298
      %vm542 = vcmask 1045504
      %v543 = vsel %vm542, %v537, %v335
      %v544 = vsel %vm542, %v538, %v336
      %v545 = vsel %vm542, %v539, %v337
      %v546 = vsel %vm542, %v540, %v338
      %v547 = vsel %vm542, %v541, %v333
      %vm548 = vcmask 1040384
      %v549 = vsel %vm548, %v335, %v370
      %v550 = vsel %vm548, %v336, %v371
      %v551 = vsel %vm548, %v337, %v372
      %v552 = vsel %vm548, %v338, %v373
      %v553 = vsel %vm548, %v333, %v368
      %vm554 = vcmask 1043456
      %v555 = vsel %vm554, %v549, %v401
      %v556 = vsel %vm554, %v550, %v402
      %v557 = vsel %vm554, %v551, %v403
      %v558 = vsel %vm554, %v552, %v404
      %v559 = vsel %vm554, %v553, %v399
      %vm560 = vcmask 1046528
      %v561 = vsel %vm560, %v555, %v436
      %v562 = vsel %vm560, %v556, %v437
      %v563 = vsel %vm560, %v557, %v438
      %v564 = vsel %vm560, %v558, %v439
      %v565 = vsel %vm560, %v559, %v434
      %vm566 = vcmask 1041408
      %v567 = vsel %vm566, %v436, %v471
      %v568 = vsel %vm566, %v437, %v472
      %v569 = vsel %vm566, %v438, %v473
      %v570 = vsel %vm566, %v439, %v474
      %v571 = vsel %vm566, %v434, %v469
      %vm572 = vcmask 1044480
      %v573 = vsel %vm572, %v567, %v506
      %v574 = vsel %vm572, %v568, %v507
      %v575 = vsel %vm572, %v569, %v508
      %v576 = vsel %vm572, %v570, %v509
      %v577 = vsel %vm572, %v571, %v504
      %v578 = vld [vmem:[%s1] sm:$0xff]
      %v579 = vld [vmem:[%s1 + $0x8] sm:$0xff]
      %v580 = vld [vmem:[%s1 + $0x10] sm:$0xff]
      %v581 = vld [vmem:[%s1 + $0x18] sm:$0xff]
      %v582 = vld [vmem:[%s2] sm:$0xff]
      %v583 = vld [vmem:[%s2 + $0x8] sm:$0xff]
      %v584 = vld [vmem:[%s2 + $0x10] sm:$0xff]
      %v585 = vld [vmem:[%s2 + $0x18] sm:$0xff]
      %587 = vset.pattern.permute.xlu0 0
      %588 = vperm.xlu0 %587, %v582
      %v589 = vpop.permute.xlu0 %588
      %592 = vset.pattern.permute.xlu0 0
      %593 = vperm.xlu0 %592, %v583
      %v594 = vpop.permute.xlu0 %593
      %597 = vset.pattern.permute.xlu0 0
      %598 = vperm.xlu0 %597, %v584
      %v599 = vpop.permute.xlu0 %598
      %602 = vset.pattern.permute.xlu0 0
      %603 = vperm.xlu0 %602, %v585
      %v604 = vpop.permute.xlu0 %603
      %621 = vrot.lane.b32.xlu0 %v543, 38
      %v622 = vpop.permute.xlu0 %621
      %623 = vrot.lane.b32.xlu0 %v544, 38
      %v624 = vpop.permute.xlu0 %623
      %625 = vrot.lane.b32.xlu0 %v545, 38
      %v626 = vpop.permute.xlu0 %625
      %627 = vrot.lane.b32.xlu0 %v546, 38
      %v628 = vpop.permute.xlu0 %627
      %629 = vrot.lane.b32.xlu0 %v547, 38
      %v630 = vpop.permute.xlu0 %629
      %631 = vrot.lane.b32.xlu0 %v561, 38
      %v632 = vpop.permute.xlu0 %631
      %633 = vrot.lane.b32.xlu0 %v562, 38
      %v634 = vpop.permute.xlu0 %633
      %635 = vrot.lane.b32.xlu0 %v563, 38
      %v636 = vpop.permute.xlu0 %635
      %637 = vrot.lane.b32.xlu0 %v564, 38
      %v638 = vpop.permute.xlu0 %637
      %639 = vrot.lane.b32.xlu0 %v565, 38
      %v640 = vpop.permute.xlu0 %639
      %641 = vrot.lane.b32.xlu0 %v573, 38
      %v642 = vpop.permute.xlu0 %641
      %643 = vrot.lane.b32.xlu0 %v574, 38
      %v644 = vpop.permute.xlu0 %643
      %645 = vrot.lane.b32.xlu0 %v575, 38
      %v646 = vpop.permute.xlu0 %645
      %647 = vrot.lane.b32.xlu0 %v576, 38
      %v648 = vpop.permute.xlu0 %647
      %649 = vrot.lane.b32.xlu0 %v577, 38
      %v650 = vpop.permute.xlu0 %649
      %651 = vrot.lane.b32.xlu0 %v525, 38
      %v652 = vpop.permute.xlu0 %651
      %653 = vrot.lane.b32.xlu0 %v533, 38
      %v654 = vpop.permute.xlu0 %653
      %655 = vrot.lane.b32.xlu0 %v534, 38
      %v656 = vpop.permute.xlu0 %655
      %657 = vrot.lane.b32.xlu0 %v535, 38
      %v658 = vpop.permute.xlu0 %657
      %659 = vrot.lane.b32.xlu0 %v531, 38
      %v660 = vpop.permute.xlu0 %659
      %vm661 = vcmask 310272
      %v662 = vsel %vm661, %v622, %v624
      %v663 = vsel %vm661, %v624, %v626
      %v664 = vsel %vm661, %v626, %v628
      %v665 = vsel %vm661, %v628, %v630
      %v666 = vsel %vm661, %v632, %v634
      %v667 = vsel %vm661, %v634, %v636
      %v668 = vsel %vm661, %v636, %v638
      %v669 = vsel %vm661, %v638, %v640
      %v670 = vsel %vm661, %v642, %v644
      %v671 = vsel %vm661, %v644, %v646
      %v672 = vsel %vm661, %v646, %v648
      %v673 = vsel %vm661, %v648, %v650
      %v674 = vsel %vm661, %v652, %v654
      %v675 = vsel %vm661, %v654, %v656
      %v676 = vsel %vm661, %v656, %v658
      %v677 = vsel %vm661, %v658, %v660
      %vm690 = vcmask 220160
      %v692 = vsel %vm690, %v578, 0
      %v695 = vsel %vm690, %v579, 0
      %v698 = vsel %vm690, %v580, 0
      %v701 = vsel %vm690, %v581, 0
      %v703 = vsel %vm536, %v674, 0
      %v705 = vsel %vm536, %v675, 0
      %v707 = vsel %vm536, %v676, 0
      %v709 = vsel %vm536, %v677, 0
      %711 = vmatpush.msra.mxu0 0.0
      %712 = vmatpush.msra.mxu0 0.0
      %713 = vmatpush.msra.mxu0 0.0
      %714 = vmatpush.msra.mxu0 0.0
      %715 = vmatpush.msra.mxu0 0.0
      %716 = vmatpush.msra.mxu0 0.0
      %717 = vmatpush.msra.mxu0 0.0
      %718 = vmatpush.msra.mxu0 0.0
      %719 = vmatpush.msra.mxu0 0.0
      %720 = vmatpush.msra.mxu0 0.0
      %721 = vmatpush.msra.mxu0 0.0
      %722 = vmatpush.msra.mxu0 0.0
      %723 = vmatpush.msra.mxu0 %v703
      %724 = vmatpush.msra.mxu0 %v670
      %725 = vmatpush.msra.mxu0 %v666
      %726 = vmatpush.msra.mxu0 %v662
      %727 = vmatmul.f32.gmra.mxu0 %v692
      %v728 = vpop.f32.mrf.mxu0
      %v729 = vadd.f32 %v589, %v728
      %730 = vmatmul.f32.gmra.mxu0 %v695
      %v731 = vpop.f32.mrf.mxu0
      %v732 = vadd.f32 %v594, %v731
      %733 = vmatmul.f32.gmra.mxu0 %v698
      %v734 = vpop.f32.mrf.mxu0
      %v735 = vadd.f32 %v599, %v734
      %736 = vmatmul.f32.gmra.mxu0 %v701
      %v737 = vpop.f32.mrf.mxu0
      %v738 = vadd.f32 %v604, %v737
      %739 = vdwg.mxu0
      %740 = vmatpush.msra.mxu0 0.0
      %741 = vmatpush.msra.mxu0 0.0
      %742 = vmatpush.msra.mxu0 0.0
      %743 = vmatpush.msra.mxu0 0.0
      %744 = vmatpush.msra.mxu0 0.0
      %745 = vmatpush.msra.mxu0 0.0
      %746 = vmatpush.msra.mxu0 0.0
      %747 = vmatpush.msra.mxu0 0.0
      %748 = vmatpush.msra.mxu0 0.0
      %749 = vmatpush.msra.mxu0 0.0
      %750 = vmatpush.msra.mxu0 0.0
      %751 = vmatpush.msra.mxu0 0.0
      %752 = vmatpush.msra.mxu0 %v705
      %753 = vmatpush.msra.mxu0 %v671
      %754 = vmatpush.msra.mxu0 %v667
      %755 = vmatpush.msra.mxu0 %v663
      %756 = vmatmul.f32.gmra.mxu0 %v692
      %v757 = vpop.f32.mrf.mxu0
      %v758 = vadd.f32 %v589, %v757
      %759 = vmatmul.f32.gmra.mxu0 %v695
      %v760 = vpop.f32.mrf.mxu0
      %v761 = vadd.f32 %v594, %v760
      %762 = vmatmul.f32.gmra.mxu0 %v698
      %v763 = vpop.f32.mrf.mxu0
      %v764 = vadd.f32 %v599, %v763
      %765 = vmatmul.f32.gmra.mxu0 %v701
      %v766 = vpop.f32.mrf.mxu0
      %v767 = vadd.f32 %v604, %v766
      %768 = vdwg.mxu0
      %769 = vmatpush.msra.mxu0 0.0
      %770 = vmatpush.msra.mxu0 0.0
      %771 = vmatpush.msra.mxu0 0.0
      %772 = vmatpush.msra.mxu0 0.0
      %773 = vmatpush.msra.mxu0 0.0
      %774 = vmatpush.msra.mxu0 0.0
      %775 = vmatpush.msra.mxu0 0.0
      %776 = vmatpush.msra.mxu0 0.0
      %777 = vmatpush.msra.mxu0 0.0
      %778 = vmatpush.msra.mxu0 0.0
      %779 = vmatpush.msra.mxu0 0.0
      %780 = vmatpush.msra.mxu0 0.0
      %781 = vmatpush.msra.mxu0 %v707
      %782 = vmatpush.msra.mxu0 %v672
      %783 = vmatpush.msra.mxu0 %v668
      %784 = vmatpush.msra.mxu0 %v664
      %785 = vmatmul.f32.gmra.mxu0 %v692
      %v786 = vpop.f32.mrf.mxu0
      %v787 = vadd.f32 %v589, %v786
      %788 = vmatmul.f32.gmra.mxu0 %v695
      %v789 = vpop.f32.mrf.mxu0
      %v790 = vadd.f32 %v594, %v789
      %791 = vmatmul.f32.gmra.mxu0 %v698
      %v792 = vpop.f32.mrf.mxu0
      %v793 = vadd.f32 %v599, %v792
      %794 = vmatmul.f32.gmra.mxu0 %v701
      %v795 = vpop.f32.mrf.mxu0
      %v796 = vadd.f32 %v604, %v795
      %797 = vdwg.mxu0
      %798 = vmatpush.msra.mxu0 0.0
      %799 = vmatpush.msra.mxu0 0.0
      %800 = vmatpush.msra.mxu0 0.0
      %801 = vmatpush.msra.mxu0 0.0
      %802 = vmatpush.msra.mxu0 0.0
      %803 = vmatpush.msra.mxu0 0.0
      %804 = vmatpush.msra.mxu0 0.0
      %805 = vmatpush.msra.mxu0 0.0
      %806 = vmatpush.msra.mxu0 0.0
      %807 = vmatpush.msra.mxu0 0.0
      %808 = vmatpush.msra.mxu0 0.0
      %809 = vmatpush.msra.mxu0 0.0
      %810 = vmatpush.msra.mxu0 %v709
      %811 = vmatpush.msra.mxu0 %v673
      %812 = vmatpush.msra.mxu0 %v669
      %813 = vmatpush.msra.mxu0 %v665
      %814 = vmatmul.f32.gmra.mxu0 %v692
      %v815 = vpop.f32.mrf.mxu0
      %v816 = vadd.f32 %v589, %v815
      %817 = vmatmul.f32.gmra.mxu0 %v695
      %v818 = vpop.f32.mrf.mxu0
      %v819 = vadd.f32 %v594, %v818
      %820 = vmatmul.f32.gmra.mxu0 %v698
      %v821 = vpop.f32.mrf.mxu0
      %v822 = vadd.f32 %v599, %v821
      %823 = vmatmul.f32.gmra.mxu0 %v701
      %v824 = vpop.f32.mrf.mxu0
      %v825 = vadd.f32 %v604, %v824
      %826 = vdwg.mxu0
      %v827 = vld [vmem:[%s3] sm:$0xf]
      %v829 = vperm.slane %v827, 0
      %v830 = vperm.slane %v827, 1
      %v831 = vperm.slane %v827, 2
      %v832 = vperm.slane %v827, 3
      %v837 = vmul.f32 %v729, %v829
      %v838 = vmul.f32 %v758, %v830
      %v839 = vmul.f32 %v787, %v831
      %v840 = vmul.f32 %v816, %v832
      %v841 = vmul.f32 %v732, %v829
      %v842 = vmul.f32 %v761, %v830
      %v843 = vmul.f32 %v790, %v831
      %v844 = vmul.f32 %v819, %v832
      %v845 = vmul.f32 %v735, %v829
      %v846 = vmul.f32 %v764, %v830
      %v847 = vmul.f32 %v793, %v831
      %v848 = vmul.f32 %v822, %v832
      %v849 = vmul.f32 %v738, %v829
      %v850 = vmul.f32 %v767, %v830
      %v851 = vmul.f32 %v796, %v831
      %v852 = vmul.f32 %v825, %v832
      %v853 = vpack.c.bf16 %v838, %v837
      %v854 = vpack.c.bf16 %v840, %v839
      %v855 = vpack.c.bf16 %v842, %v841
      %v856 = vpack.c.bf16 %v844, %v843
      %v857 = vpack.c.bf16 %v846, %v845
      %v858 = vpack.c.bf16 %v848, %v847
      %v859 = vpack.c.bf16 %v850, %v849
      %v860 = vpack.c.bf16 %v852, %v851
      %v869 = vunpack.c.l.b16 %v853
      %v870 = vunpack.c.h.b16 %v853
      %v871 = vunpack.c.l.b16 %v854
      %v872 = vunpack.c.l.b16 %v855
      %v873 = vunpack.c.h.b16 %v855
      %v874 = vunpack.c.l.b16 %v856
      %v875 = vunpack.c.l.b16 %v857
      %v876 = vunpack.c.h.b16 %v857
      %v877 = vunpack.c.l.b16 %v858
      %v878 = vunpack.c.l.b16 %v859
      %v879 = vunpack.c.h.b16 %v859
      %v880 = vunpack.c.l.b16 %v860
      %v881 = vpack.c.b16 %v872, %v869
      %v882 = vpack.c.b16 %v873, %v870
      %v883 = vpack.c.b16 %v874, %v871
      %v884 = vpack.c.b16 %v878, %v875
      %v885 = vpack.c.b16 %v879, %v876
      %v886 = vpack.c.b16 %v880, %v877
      %v893 = vunpack.c.h.b16 %v854
      %v894 = vunpack.c.h.b16 %v856
      %v895 = vunpack.c.h.b16 %v858
      %v896 = vunpack.c.h.b16 %v860
      %v897 = vpack.c.b16 %v894, %v893
      %v898 = vpack.c.b16 %v896, %v895
      %899 = vrot.lane.b32.xlu0 %v881, 127
      %v900 = vpop.permute.xlu0 %899
      %901 = vrot.lane.b32.xlu0 %v882, 127
      %v902 = vpop.permute.xlu0 %901
      %903 = vrot.lane.b32.xlu0 %v883, 127
      %v904 = vpop.permute.xlu0 %903
      %905 = vrot.lane.b32.xlu0 %v897, 127
      %v906 = vpop.permute.xlu0 %905
      %907 = vrot.lane.b32.xlu0 %v884, 127
      %v908 = vpop.permute.xlu0 %907
      %909 = vrot.lane.b32.xlu0 %v885, 127
      %v910 = vpop.permute.xlu0 %909
      %911 = vrot.lane.b32.xlu0 %v886, 127
      %v912 = vpop.permute.xlu0 %911
      %913 = vrot.lane.b32.xlu0 %v898, 127
      %v914 = vpop.permute.xlu0 %913
      %vm915 = vcmask 1039360
      %v916 = vsel %vm915, %v900, %v902
      %v917 = vsel %vm915, %v902, %v904
      %v918 = vsel %vm915, %v904, %v906
      %v919 = vsel %vm915, %v908, %v910
      %v920 = vsel %vm915, %v910, %v912
      %v921 = vsel %vm915, %v912, %v914
      %928 = vrot.lane.b32.xlu0 %v881, 126
      %v929 = vpop.permute.xlu0 %928
      %930 = vrot.lane.b32.xlu0 %v882, 126
      %v931 = vpop.permute.xlu0 %930
      %932 = vrot.lane.b32.xlu0 %v883, 126
      %v933 = vpop.permute.xlu0 %932
      %934 = vrot.lane.b32.xlu0 %v897, 126
      %v935 = vpop.permute.xlu0 %934
      %936 = vrot.lane.b32.xlu0 %v884, 126
      %v937 = vpop.permute.xlu0 %936
      %938 = vrot.lane.b32.xlu0 %v885, 126
      %v939 = vpop.permute.xlu0 %938
      %940 = vrot.lane.b32.xlu0 %v886, 126
      %v941 = vpop.permute.xlu0 %940
      %942 = vrot.lane.b32.xlu0 %v898, 126
      %v943 = vpop.permute.xlu0 %942
      %vm944 = vcmask 1031168
      %v945 = vsel %vm944, %v929, %v931
      %v946 = vsel %vm944, %v931, %v933
      %v947 = vsel %vm944, %v933, %v935
      %v948 = vsel %vm944, %v937, %v939
      %v949 = vsel %vm944, %v939, %v941
      %v950 = vsel %vm944, %v941, %v943
      %957 = vrot.lane.b32.xlu0 %v881, 110
      %v958 = vpop.permute.xlu0 %957
      %959 = vrot.lane.b32.xlu0 %v882, 110
      %v960 = vpop.permute.xlu0 %959
      %961 = vrot.lane.b32.xlu0 %v883, 110
      %v962 = vpop.permute.xlu0 %961
      %963 = vrot.lane.b32.xlu0 %v897, 110
      %v964 = vpop.permute.xlu0 %963
      %965 = vrot.lane.b32.xlu0 %v884, 110
      %v966 = vpop.permute.xlu0 %965
      %967 = vrot.lane.b32.xlu0 %v885, 110
      %v968 = vpop.permute.xlu0 %967
      %969 = vrot.lane.b32.xlu0 %v886, 110
      %v970 = vpop.permute.xlu0 %969
      %971 = vrot.lane.b32.xlu0 %v898, 110
      %v972 = vpop.permute.xlu0 %971
      %vm973 = vcmask 900096
      %v974 = vsel %vm973, %v958, %v960
      %v975 = vsel %vm973, %v960, %v962
      %v976 = vsel %vm973, %v962, %v964
      %v977 = vsel %vm973, %v966, %v968
      %v978 = vsel %vm973, %v968, %v970
      %v979 = vsel %vm973, %v970, %v972
      %986 = vrot.lane.b32.xlu0 %v881, 109
      %v987 = vpop.permute.xlu0 %986
      %988 = vrot.lane.b32.xlu0 %v882, 109
      %v989 = vpop.permute.xlu0 %988
      %990 = vrot.lane.b32.xlu0 %v883, 109
      %v991 = vpop.permute.xlu0 %990
      %992 = vrot.lane.b32.xlu0 %v897, 109
      %v993 = vpop.permute.xlu0 %992
      %994 = vrot.lane.b32.xlu0 %v884, 109
      %v995 = vpop.permute.xlu0 %994
      %996 = vrot.lane.b32.xlu0 %v885, 109
      %v997 = vpop.permute.xlu0 %996
      %998 = vrot.lane.b32.xlu0 %v886, 109
      %v999 = vpop.permute.xlu0 %998
      %1000 = vrot.lane.b32.xlu0 %v898, 109
      %v1001 = vpop.permute.xlu0 %1000
      %vm1002 = vcmask 891904
      %v1003 = vsel %vm1002, %v987, %v989
      %v1004 = vsel %vm1002, %v989, %v991
      %v1005 = vsel %vm1002, %v991, %v993
      %v1006 = vsel %vm1002, %v995, %v997
      %v1007 = vsel %vm1002, %v997, %v999
      %v1008 = vsel %vm1002, %v999, %v1001
      %1015 = vrot.lane.b32.xlu0 %v881, 108
      %v1016 = vpop.permute.xlu0 %1015
      %1017 = vrot.lane.b32.xlu0 %v882, 108
      %v1018 = vpop.permute.xlu0 %1017
      %1019 = vrot.lane.b32.xlu0 %v883, 108
      %v1020 = vpop.permute.xlu0 %1019
      %1021 = vrot.lane.b32.xlu0 %v897, 108
      %v1022 = vpop.permute.xlu0 %1021
      %1023 = vrot.lane.b32.xlu0 %v884, 108
      %v1024 = vpop.permute.xlu0 %1023
      %1025 = vrot.lane.b32.xlu0 %v885, 108
      %v1026 = vpop.permute.xlu0 %1025
      %1027 = vrot.lane.b32.xlu0 %v886, 108
      %v1028 = vpop.permute.xlu0 %1027
      %1029 = vrot.lane.b32.xlu0 %v898, 108
      %v1030 = vpop.permute.xlu0 %1029
      %vm1031 = vcmask 883712
      %v1032 = vsel %vm1031, %v1016, %v1018
      %v1033 = vsel %vm1031, %v1018, %v1020
      %v1034 = vsel %vm1031, %v1020, %v1022
      %v1035 = vsel %vm1031, %v1024, %v1026
      %v1036 = vsel %vm1031, %v1026, %v1028
      %v1037 = vsel %vm1031, %v1028, %v1030
      %1044 = vrot.lane.b32.xlu0 %v881, 92
      %v1045 = vpop.permute.xlu0 %1044
      %1046 = vrot.lane.b32.xlu0 %v882, 92
      %v1047 = vpop.permute.xlu0 %1046
      %1048 = vrot.lane.b32.xlu0 %v883, 92
      %v1049 = vpop.permute.xlu0 %1048
      %1050 = vrot.lane.b32.xlu0 %v897, 92
      %v1051 = vpop.permute.xlu0 %1050
      %1052 = vrot.lane.b32.xlu0 %v884, 92
      %v1053 = vpop.permute.xlu0 %1052
      %1054 = vrot.lane.b32.xlu0 %v885, 92
      %v1055 = vpop.permute.xlu0 %1054
      %1056 = vrot.lane.b32.xlu0 %v886, 92
      %v1057 = vpop.permute.xlu0 %1056
      %1058 = vrot.lane.b32.xlu0 %v898, 92
      %v1059 = vpop.permute.xlu0 %1058
      %vm1060 = vcmask 752640
      %v1061 = vsel %vm1060, %v1045, %v1047
      %v1062 = vsel %vm1060, %v1047, %v1049
      %v1063 = vsel %vm1060, %v1049, %v1051
      %v1064 = vsel %vm1060, %v1053, %v1055
      %v1065 = vsel %vm1060, %v1055, %v1057
      %v1066 = vsel %vm1060, %v1057, %v1059
      %1073 = vrot.lane.b32.xlu0 %v881, 91
      %v1074 = vpop.permute.xlu0 %1073
      %1075 = vrot.lane.b32.xlu0 %v882, 91
      %v1076 = vpop.permute.xlu0 %1075
      %1077 = vrot.lane.b32.xlu0 %v883, 91
      %v1078 = vpop.permute.xlu0 %1077
      %1079 = vrot.lane.b32.xlu0 %v897, 91
      %v1080 = vpop.permute.xlu0 %1079
      %1081 = vrot.lane.b32.xlu0 %v884, 91
      %v1082 = vpop.permute.xlu0 %1081
      %1083 = vrot.lane.b32.xlu0 %v885, 91
      %v1084 = vpop.permute.xlu0 %1083
      %1085 = vrot.lane.b32.xlu0 %v886, 91
      %v1086 = vpop.permute.xlu0 %1085
      %1087 = vrot.lane.b32.xlu0 %v898, 91
      %v1088 = vpop.permute.xlu0 %1087
      %vm1089 = vcmask 744448
      %v1090 = vsel %vm1089, %v1074, %v1076
      %v1091 = vsel %vm1089, %v1076, %v1078
      %v1092 = vsel %vm1089, %v1078, %v1080
      %v1093 = vsel %vm1089, %v1082, %v1084
      %v1094 = vsel %vm1089, %v1084, %v1086
      %v1095 = vsel %vm1089, %v1086, %v1088
      %1102 = vrot.lane.b32.xlu0 %v881, 90
      %v1103 = vpop.permute.xlu0 %1102
      %1104 = vrot.lane.b32.xlu0 %v882, 90
      %v1105 = vpop.permute.xlu0 %1104
      %1106 = vrot.lane.b32.xlu0 %v883, 90
      %v1107 = vpop.permute.xlu0 %1106
      %1108 = vrot.lane.b32.xlu0 %v897, 90
      %v1109 = vpop.permute.xlu0 %1108
      %1110 = vrot.lane.b32.xlu0 %v884, 90
      %v1111 = vpop.permute.xlu0 %1110
      %1112 = vrot.lane.b32.xlu0 %v885, 90
      %v1113 = vpop.permute.xlu0 %1112
      %1114 = vrot.lane.b32.xlu0 %v886, 90
      %v1115 = vpop.permute.xlu0 %1114
      %1116 = vrot.lane.b32.xlu0 %v898, 90
      %v1117 = vpop.permute.xlu0 %1116
      %vm1118 = vcmask 736256
      %v1119 = vsel %vm1118, %v1103, %v1105
      %v1120 = vsel %vm1118, %v1105, %v1107
      %v1121 = vsel %vm1118, %v1107, %v1109
      %v1122 = vsel %vm1118, %v1111, %v1113
      %v1123 = vsel %vm1118, %v1113, %v1115
      %v1124 = vsel %vm1118, %v1115, %v1117
      %v1131 = vld [vmem:[%s4] sm:$0x3f]
      %v1132 = vld [vmem:[%s5] sm:$0x7]
      %1134 = vset.pattern.permute.xlu0 0
      %1135 = vperm.xlu0 %1134, %v1132
      %v1136 = vpop.permute.xlu0 %1135
      %1139 = vst [vmem:[#allocation1] ss:$4 sm:$0xff] %v1131
      %v1140 = vld.sshfl [vmem:[#allocation1] sm:$0xff pattern:$0x73625140]
      %v1141 = vld.sshfl [vmem:[#allocation1 + $0x8] sm:$0xff pattern:$0x73625140]
      %v1142 = vld.sshfl [vmem:[#allocation1 + $0x10] sm:$0xff pattern:$0x73625140]
      %vm1145 = vcmask 261120
      %v1146 = vsel %vm1145, %v1142, 0
      %1148 = vmatpush.bf16.msra.mxu0 %v977
      %1149 = vmatpush.bf16.msra.mxu0 %v974
      %1150 = vmatpush.bf16.msra.mxu0 %v948
      %1151 = vmatpush.bf16.msra.mxu0 %v945
      %1152 = vmatpush.bf16.msra.mxu0 %v919
      %1153 = vmatpush.bf16.msra.mxu0 %v916
      %1154 = vmatpush.bf16.msra.mxu0 %v884
      %1155 = vmatpush.bf16.msra.mxu0 %v881
      %1156 = vmatmul.bf16.gmra.mxu0 %v1140
      %v1157 = vpop.f32.mrf.mxu0
      %v1158 = vadd.f32 %v1136, %v1157
      %v1159 = vpop.f32.mrf.mxu0
      %1160 = vdwg.mxu0
      %1161 = vmatpush.bf16.msra.mxu0 %v1093
      %1162 = vmatpush.bf16.msra.mxu0 %v1090
      %1163 = vmatpush.bf16.msra.mxu0 %v1064
      %1164 = vmatpush.bf16.msra.mxu0 %v1061
      %1165 = vmatpush.bf16.msra.mxu0 %v1035
      %1166 = vmatpush.bf16.msra.mxu0 %v1032
      %1167 = vmatpush.bf16.msra.mxu0 %v1006
      %1168 = vmatpush.bf16.msra.mxu0 %v1003
      %1169 = vmatmul.bf16.gmra.mxu0 %v1141
      %v1170 = vpop.f32.mrf.mxu0
      %v1171 = vadd.f32 %v1158, %v1170
      %v1172 = vpop.f32.mrf.mxu0
      %1173 = vdwg.mxu0
      %1174 = vmatpush.bf16.msra.mxu0 0
      %1175 = vmatpush.bf16.msra.mxu0 0
      %1176 = vmatpush.bf16.msra.mxu0 0
      %1177 = vmatpush.bf16.msra.mxu0 0
      %1178 = vmatpush.bf16.msra.mxu0 0
      %1179 = vmatpush.bf16.msra.mxu0 0
      %1180 = vmatpush.bf16.msra.mxu0 %v1122
      %1181 = vmatpush.bf16.msra.mxu0 %v1119
      %1182 = vmatmul.bf16.gmra.mxu0 %v1146
      %v1183 = vpop.f32.mrf.mxu0
      %v1184 = vadd.f32 %v1171, %v1183
      %v1185 = vpop.f32.mrf.mxu0
      %1186 = vdwg.mxu0
      %1187 = vmatpush.bf16.msra.mxu0 %v978
      %1188 = vmatpush.bf16.msra.mxu0 %v975
      %1189 = vmatpush.bf16.msra.mxu0 %v949
      %1190 = vmatpush.bf16.msra.mxu0 %v946
      %1191 = vmatpush.bf16.msra.mxu0 %v920
      %1192 = vmatpush.bf16.msra.mxu0 %v917
      %1193 = vmatpush.bf16.msra.mxu0 %v885
      %1194 = vmatpush.bf16.msra.mxu0 %v882
      %1195 = vmatmul.bf16.gmra.mxu0 %v1140
      %v1196 = vpop.f32.mrf.mxu0
      %v1197 = vadd.f32 %v1136, %v1196
      %v1198 = vpop.f32.mrf.mxu0
      %1199 = vdwg.mxu0
      %1200 = vmatpush.bf16.msra.mxu0 %v1094
      %1201 = vmatpush.bf16.msra.mxu0 %v1091
      %1202 = vmatpush.bf16.msra.mxu0 %v1065
      %1203 = vmatpush.bf16.msra.mxu0 %v1062
      %1204 = vmatpush.bf16.msra.mxu0 %v1036
      %1205 = vmatpush.bf16.msra.mxu0 %v1033
      %1206 = vmatpush.bf16.msra.mxu0 %v1007
      %1207 = vmatpush.bf16.msra.mxu0 %v1004
      %1208 = vmatmul.bf16.gmra.mxu0 %v1141
      %v1209 = vpop.f32.mrf.mxu0
      %v1210 = vadd.f32 %v1197, %v1209
      %v1211 = vpop.f32.mrf.mxu0
      %1212 = vdwg.mxu0
      %1213 = vmatpush.bf16.msra.mxu0 0
      %1214 = vmatpush.bf16.msra.mxu0 0
      %1215 = vmatpush.bf16.msra.mxu0 0
      %1216 = vmatpush.bf16.msra.mxu0 0
      %1217 = vmatpush.bf16.msra.mxu0 0
      %1218 = vmatpush.bf16.msra.mxu0 0
      %1219 = vmatpush.bf16.msra.mxu0 %v1123
      %1220 = vmatpush.bf16.msra.mxu0 %v1120
      %1221 = vmatmul.bf16.gmra.mxu0 %v1146
      %v1222 = vpop.f32.mrf.mxu0
      %v1223 = vadd.f32 %v1210, %v1222
      %v1224 = vpop.f32.mrf.mxu0
      %1225 = vdwg.mxu0
      %1226 = vmatpush.bf16.msra.mxu0 %v979
      %1227 = vmatpush.bf16.msra.mxu0 %v976
      %1228 = vmatpush.bf16.msra.mxu0 %v950
      %1229 = vmatpush.bf16.msra.mxu0 %v947
      %1230 = vmatpush.bf16.msra.mxu0 %v921
      %1231 = vmatpush.bf16.msra.mxu0 %v918
      %1232 = vmatpush.bf16.msra.mxu0 %v886
      %1233 = vmatpush.bf16.msra.mxu0 %v883
      %1234 = vmatmul.bf16.gmra.mxu0 %v1140
      %v1235 = vpop.f32.mrf.mxu0
      %v1236 = vadd.f32 %v1136, %v1235
      %v1237 = vpop.f32.mrf.mxu0
      %1238 = vdwg.mxu0
      %1239 = vmatpush.bf16.msra.mxu0 %v1095
      %1240 = vmatpush.bf16.msra.mxu0 %v1092
      %1241 = vmatpush.bf16.msra.mxu0 %v1066
      %1242 = vmatpush.bf16.msra.mxu0 %v1063
      %1243 = vmatpush.bf16.msra.mxu0 %v1037
      %1244 = vmatpush.bf16.msra.mxu0 %v1034
      %1245 = vmatpush.bf16.msra.mxu0 %v1008
      %1246 = vmatpush.bf16.msra.mxu0 %v1005
      %1247 = vmatmul.bf16.gmra.mxu0 %v1141
      %v1248 = vpop.f32.mrf.mxu0
      %v1249 = vadd.f32 %v1236, %v1248
      %v1250 = vpop.f32.mrf.mxu0
      %1251 = vdwg.mxu0
      %1252 = vmatpush.bf16.msra.mxu0 0
      %1253 = vmatpush.bf16.msra.mxu0 0
      %1254 = vmatpush.bf16.msra.mxu0 0
      %1255 = vmatpush.bf16.msra.mxu0 0
      %1256 = vmatpush.bf16.msra.mxu0 0
      %1257 = vmatpush.bf16.msra.mxu0 0
      %1258 = vmatpush.bf16.msra.mxu0 %v1124
      %1259 = vmatpush.bf16.msra.mxu0 %v1121
      %1260 = vmatmul.bf16.gmra.mxu0 %v1146
      %v1261 = vpop.f32.mrf.mxu0
      %v1262 = vadd.f32 %v1249, %v1261
      %v1263 = vpop.f32.mrf.mxu0
      %1264 = vdwg.mxu0
      %v1265 = vmax.f32 %v1184, 0.0
      %v1266 = vmax.f32 %v1223, 0.0
      %v1267 = vmax.f32 %v1262, 0.0
      %v1270 = vrot.slane %v1266, 4
      %v1271 = vsel %vm554, %v1265, %v1270
      %1273 = vst [vmem:[%s251] sm:$0x77] %v1271
      %1274 = vst [vmem:[%s251 + $0x8] sm:$0x7] %v1267
      %p1275 = scmp.lt.s32.totalorder %s17, 1
      %s1276 = scalar_select %p1275, %s17, 1
      %s1277 = smul.addr %s1276, 3
      %s1278 = smul.addr %s1277, 4
      %s1279 = scalar_lea.vmem %s6, %s1278
      // Predicated region
      $region45: #{cc_module_forward.1} parent=43 // pred_check
        %p1280 = pneg %p166
      $region46: #{cc_module_forward.1} parent=43 // pred_check_branch
        %1282 = sbr.rel (%p1280) target = $region48
      $region47: #{cc_module_forward.1} parent=43 // pred_region
        _
      $region48: #{cc_module_forward.1} parent=43 // pred_fallthru
        _
    $region44: #{cc_module_forward.1} parent=5 // pred_fallthru
      _
    %p1283 = scmp.le.s32.totalorder 2, %s12
    // Predicated region
    $region49: #{cc_module_forward.1} parent=5 // pred_check
      %p1284 = pneg %p1283
    $region50: #{cc_module_forward.1} parent=5 // pred_check_branch
      %1286 = sbr.rel (%p1284) target = $region52
    $region51: #{cc_module_forward.1} parent=5 // pred_region
      %s1287 = ssub.s32 %s12, 2
      // Predicated region
      $region53: #{cc_module_forward.1} parent=51 // pred_check
        %p1288 = pneg %p172
      $region54: #{cc_module_forward.1} parent=51 // pred_check_branch
        %1290 = sbr.rel (%p1288) target = $region56
      $region55: #{cc_module_forward.1} parent=51 // pred_region
        %p1291 = scmp.lt.s32.totalorder %s18, 1
        %s1292 = scalar_select %p1291, %s18, 1
        %s1293 = smul.addr %s1292, 3
        %s1294 = smul.addr %s1293, 4
        %s1295 = scalar_lea.vmem %s6, %s1294
      $region56: #{cc_module_forward.1} parent=51 // pred_fallthru
        _
    $region52: #{cc_module_forward.1} parent=5 // pred_fallthru
      _
  $region6: #{cc_module_forward.1} parent=0 // loop_footer
    %s16 = sadd.s32 1, %s12
  $region7: #{cc_module_forward.1} parent=0 // loop_footer_branch
    %11 = sbr.rel target = $region3
  $region8: #{cc_module_forward.1} parent=0 // loop_exit
    _

</llo_original>
